<compile_context>
chip_gen: v7x
topology: tpu7x:2x2x1
jax: 0.10.0
libtpu: 0.0.40
codegen_flags: <defaults>
</compile_context>

<pallas_src>
import functools

import numpy as np
import jax
import jax.numpy as jnp
from jax import lax
from jax.experimental import pallas as pl
from jax.experimental.pallas import tpu as pltpu

SQRT_HALF = 0.7071067811865476


def _gelu(x):
    # exact (erf-based) GELU, matching torch.nn.functional.gelu default
    return 0.5 * x * (1.0 + lax.erf(x * SQRT_HALF))


def _round_up(x, m):
    return ((x + m - 1) // m) * m


def _pad2(a, rows, cols, dtype=jnp.float32):
    a = jnp.asarray(a, jnp.float32)
    out = jnp.zeros((rows, cols), jnp.float32).at[: a.shape[0], : a.shape[1]].set(a)
    return out.astype(dtype)


# ---------------------------------------------------------------------------
# Pointwise projection MLP: f(y) = GELU(y @ Wp1 + bp1) @ Wp2 + bp2
# Hoisted out of the (i, j) integral loop (it is per input point only).
# ---------------------------------------------------------------------------
def _proj_kernel(x_ref, w1_ref, b1_ref, w2_ref, b2_ref, o_ref):
    h = _gelu(jnp.dot(x_ref[...], w1_ref[...],
                      preferred_element_type=jnp.float32) + b1_ref[...])
    o_ref[...] = jnp.dot(h, w2_ref[...],
                         preferred_element_type=jnp.float32) + b2_ref[...]


# ---------------------------------------------------------------------------
# Fused integral-transform kernel: pairwise kernel MLP + masked mean reduce.
# grid = (M_pad // tm, N_pad // tn); j (input points) is the reduction axis.
# ---------------------------------------------------------------------------
def _gno_kernel(flags_ref, xg_ref, yg_ref, f_ref,
                w1y_ref, w1x_ref, b1_ref, w2_ref, b2_ref, w3_ref, b3_ref,
                o_ref, acc_ref, cnt_ref, ax_ref,
                *, tm, tn, cp, h1p, h2p, n_valid, radius2):
    i = pl.program_id(0)
    j = pl.program_id(1)
    nj = pl.num_programs(1)

    @pl.when(j == 0)
    def _init():
        acc_ref[...] = jnp.zeros_like(acc_ref)
        cnt_ref[...] = jnp.zeros_like(cnt_ref)
        # cache the j-invariant x-side term of kernel-MLP layer 1 for this output tile
        ax_ref[...] = jnp.dot(xg_ref[...], w1x_ref[...],
                              preferred_element_type=jnp.float32)

    # Skip tile pairs with no points inside the radius (bbox-based occupancy flag).
    @pl.when(flags_ref[i * nj + j] > 0)
    def _compute():
        x = xg_ref[...]                                           # (tm, d)  output points
        y = yg_ref[...]                                           # (tn, d)  input points

        # radius neighbour mask; padded input columns excluded explicitly (no sentinels)
        diff = x[:, None, :] - y[None, :, :]                      # (tm, tn, d)
        d2 = jnp.sum(diff * diff, axis=-1)                        # (tm, tn)
        col = j * tn + lax.broadcasted_iota(jnp.int32, (1, tn), 1)
        mask = (d2 <= radius2) & (col < n_valid)
        maskf = mask.astype(jnp.float32)

        f_tile = f_ref[...]                                       # (tn, cp)  f32

        # kernel-MLP layer 1 (tiny K=d, kept f32); b1 folded into the y-side term
        ayb = jnp.dot(y, w1y_ref[...],
                      preferred_element_type=jnp.float32) + b1_ref[...]            # (tn, h1p)
        h1 = _gelu(ax_ref[...][:, None, :] + ayb[None, :, :])                      # (tm, tn, h1p)

        # kernel-MLP layer 2 on the MXU in bf16 (weights already bf16), f32 accumulate
        h2 = _gelu(jnp.dot(h1.reshape(tm * tn, h1p).astype(jnp.bfloat16), w2_ref[...],
                           preferred_element_type=jnp.float32) + b2_ref[...])      # (tm*tn, h2p)

        # fuse the radius mask + bf16 cast into the operand of the final contraction
        h2m = (h2.reshape(tm, tn, h2p) * maskf[:, :, None]).astype(jnp.bfloat16)   # (tm, tn, h2p)

        # last layer folded with the f(y) weighting into ONE deep-K MXU matmul:
        #   s1[i, c] = sum_{j,k} h2m[i, j, k] * f[j, c] * W3[k, c]
        t = (f_tile[:, None, :] * w3_ref[...][None, :, :]).astype(jnp.bfloat16)    # (tn, h2p, cp)
        s1 = jnp.dot(h2m.reshape(tm, tn * h2p), t.reshape(tn * h2p, cp),
                     preferred_element_type=jnp.float32)                           # (tm, cp)

        # bias term of the last layer handled analytically:  b3_c * sum_j mask_ij f_jc
        fsum = jnp.dot(maskf, f_tile, preferred_element_type=jnp.float32)          # (tm, cp)

        acc_ref[...] += s1 + fsum * b3_ref[...]
        cnt_ref[...] += jnp.sum(maskf, axis=1, keepdims=True)

    @pl.when(j == nj - 1)
    def _finalize():
        o_ref[...] = acc_ref[...] / jnp.maximum(cnt_ref[...], 1.0)


# ---------------------------------------------------------------------------
# GNO forward (wrapper)
# ---------------------------------------------------------------------------
def gno_forward(inp, input_grid, output_grid, proj_params, kernel_params, radius,
                tm=128, tn=64):
    # The reference module only ever uses x[0, ...]; the projection is pointwise so
    # computing it on inp[0] alone gives the identical output.
    x0 = jnp.asarray(inp[0], jnp.float32)
    m, d = output_grid.shape
    n = input_grid.shape[0]
    cin = x0.shape[1]

    wp1, bp1, wp2, bp2 = proj_params
    w1, b1, w2, b2, w3, b3 = kernel_params
    hp = wp1.shape[1]
    h1 = w1.shape[1]
    h2 = w2.shape[1]
    c = w3.shape[1]

    # lane-dense padded widths
    HPP = _round_up(hp, 128)
    H1P = _round_up(h1, 128)
    H2P = _round_up(h2, 128)
    CP = _round_up(c, 128)

    # tile sizes (multiples of 8, clamped to padded problem size)
    tm_ = min(_round_up(tm, 8), _round_up(m, 8))
    tn_ = min(_round_up(tn, 8), _round_up(n, 8))
    m_pad = _round_up(m, tm_)
    n_pad = _round_up(n, tn_)
    gi = m_pad // tm_
    gj = n_pad // tn_

    # padded operands: edge-replicated coordinates (bf16-safe, keeps bounding boxes tight);
    # padded input columns are excluded in-kernel by an explicit index-validity mask.
    og = jnp.pad(jnp.asarray(output_grid, jnp.float32), ((0, m_pad - m), (0, 0)), mode="edge")
    ig = jnp.pad(jnp.asarray(input_grid, jnp.float32), ((0, n_pad - n), (0, 0)), mode="edge")
    x0p = jnp.zeros((n_pad, cin), jnp.float32).at[:n, :].set(x0)

    wp1p = _pad2(wp1, cin, HPP)
    bp1p = _pad2(bp1, 1, HPP)
    wp2p = _pad2(wp2, HPP, CP)
    bp2p = _pad2(bp2, 1, CP)
    w1yp = _pad2(w1[:d, :], d, H1P)
    w1xp = _pad2(w1[d:, :], d, H1P)
    b1p = _pad2(b1, 1, H1P)
    w2p = _pad2(w2, H1P, H2P, jnp.bfloat16)            # bf16 MXU operand
    b2p = _pad2(b2, 1, H2P)
    w3p = _pad2(w3, H2P, CP)                            # (H2P, CP): no in-kernel transpose
    b3p = _pad2(b3, 1, CP)

    radius2 = float(np.float32(radius) ** 2)

    # ---- projection MLP f(y), once, in a tiny separate pallas_call ----
    f_pad = pl.pallas_call(
        _proj_kernel,
        out_shape=jax.ShapeDtypeStruct((n_pad, CP), jnp.float32),
        grid_spec=pltpu.PrefetchScalarGridSpec(
            num_scalar_prefetch=0,
            grid=(gj,),
            in_specs=[
                pl.BlockSpec((tn_, cin), lambda p: (p, 0)),
                pl.BlockSpec((cin, HPP), lambda p: (0, 0)),
                pl.BlockSpec((1, HPP), lambda p: (0, 0)),
                pl.BlockSpec((HPP, CP), lambda p: (0, 0)),
                pl.BlockSpec((1, CP), lambda p: (0, 0)),
            ],
            out_specs=pl.BlockSpec((tn_, CP), lambda p: (p, 0)),
        ),
        compiler_params=pltpu.CompilerParams(dimension_semantics=("parallel",)),
    )(x0p, wp1p, bp1p, wp2p, bp2p)

    # per-tile-pair occupancy flags from per-tile bounding boxes (conservative, O(gi*gj*d));
    # replaces the dense O(M*N) distance matrix. Stored flattened 1-D for SMEM friendliness.
    og_t = og.reshape(gi, tm_, d)
    ig_t = ig.reshape(gj, tn_, d)
    lo_o, hi_o = og_t.min(axis=1), og_t.max(axis=1)
    lo_i, hi_i = ig_t.min(axis=1), ig_t.max(axis=1)
    gap = jnp.maximum(0.0, jnp.maximum(lo_o[:, None, :] - hi_i[None, :, :],
                                       lo_i[None, :, :] - hi_o[:, None, :]))
    box_d2 = jnp.sum(gap * gap, axis=-1)                                  # (gi, gj)
    flags = (box_d2 <= jnp.float32(radius2)).astype(jnp.int32).reshape(-1)

    # VMEM budget estimate for the chosen tiles (h1/h2 f32, their bf16 copies, T f32+bf16)
    big_bytes = (4 * tm_ * tn_ * (H1P + H2P)
                 + 2 * tm_ * tn_ * (H1P + H2P)
                 + 6 * tn_ * H2P * CP)
    try:
        vmem_cap = int(pltpu.get_tpu_info().vmem_capacity_bytes)
    except Exception:
        vmem_cap = 64 << 20                                               # conservative (v7x)
    vmem_upper = max(32 << 20, int(0.70 * vmem_cap))
    vmem_limit = int(min(max(2 * big_bytes + (8 << 20), 32 << 20), vmem_upper))

    pair = m_pad * n_pad
    cost = pl.CostEstimate(
        flops=int(2 * pair * (H1P * H2P + H2P * CP + CP + d * H1P)
                  + 2 * n_pad * (cin * HPP + HPP * CP)),
        transcendentals=int(pair * (H1P + H2P) + n_pad * HPP),
        bytes_accessed=int(4 * (gi * n_pad * (d + CP) + m_pad * d + m_pad * CP)),
    )

    kernel = functools.partial(
        _gno_kernel, tm=tm_, tn=tn_, cp=CP, h1p=H1P, h2p=H2P,
        n_valid=n, radius2=radius2)

    out = pl.pallas_call(
        kernel,
        out_shape=jax.ShapeDtypeStruct((m_pad, CP), jnp.float32),
        grid_spec=pltpu.PrefetchScalarGridSpec(
            num_scalar_prefetch=1,
            grid=(gi, gj),
            in_specs=[
                pl.BlockSpec((tm_, d), lambda i, j, fl: (i, 0)),     # output grid tile
                pl.BlockSpec((tn_, d), lambda i, j, fl: (j, 0)),     # input grid tile
                pl.BlockSpec((tn_, CP), lambda i, j, fl: (j, 0)),    # projected features f(y)
                pl.BlockSpec((d, H1P), lambda i, j, fl: (0, 0)),     # kernel W1 (y part)
                pl.BlockSpec((d, H1P), lambda i, j, fl: (0, 0)),     # kernel W1 (x part)
                pl.BlockSpec((1, H1P), lambda i, j, fl: (0, 0)),     # kernel b1
                pl.BlockSpec((H1P, H2P), lambda i, j, fl: (0, 0)),   # kernel W2 (bf16)
                pl.BlockSpec((1, H2P), lambda i, j, fl: (0, 0)),     # kernel b2
                pl.BlockSpec((H2P, CP), lambda i, j, fl: (0, 0)),    # kernel W3
                pl.BlockSpec((1, CP), lambda i, j, fl: (0, 0)),      # kernel b3
            ],
            out_specs=pl.BlockSpec((tm_, CP), lambda i, j, fl: (i, 0)),
            scratch_shapes=[
                pltpu.VMEM((tm_, CP), jnp.float32),    # weighted-sum accumulator
                pltpu.VMEM((tm_, 1), jnp.float32),     # neighbour count
                pltpu.VMEM((tm_, H1P), jnp.float32),   # cached x @ W1_x for this output tile
            ],
        ),
        compiler_params=pltpu.CompilerParams(
            dimension_semantics=("parallel", "arbitrary"),
            vmem_limit_bytes=vmem_limit,
        ),
        cost_estimate=cost,
    )(flags, og, ig, f_pad, w1yp, w1xp, b1p, w2p, b2p, w3p, b3p)

    return out[:m, :c][None, ...]


# ---------------------------------------------------------------------------
# Pure-JAX reference (for a correctness sanity check)
# ---------------------------------------------------------------------------
def gno_reference(inp, input_grid, output_grid, proj_params, kernel_params, radius):
    wp1, bp1, wp2, bp2 = proj_params
    w1, b1, w2, b2, w3, b3 = kernel_params
    f = _gelu(inp[0] @ wp1 + bp1) @ wp2 + bp2                      # (N, C)

    yj = jnp.broadcast_to(input_grid[None, :, :],
                          (output_grid.shape[0],) + input_grid.shape)
    xi = jnp.broadcast_to(output_grid[:, None, :],
                          (output_grid.shape[0], input_grid.shape[0], output_grid.shape[1]))
    agg = jnp.concatenate([yj, xi], axis=-1)                       # (M, N, 2d)
    h = _gelu(agg @ w1 + b1)
    h = _gelu(h @ w2 + b2)
    k = h @ w3 + b3                                                # (M, N, C)

    d2 = jnp.sum((xi - yj) ** 2, axis=-1)
    mask = (d2 <= radius ** 2).astype(jnp.float32)
    contrib = k * f[None, :, :] * mask[:, :, None]
    cnt = jnp.maximum(jnp.sum(mask, axis=-1, keepdims=True), 1.0)
    out = jnp.sum(contrib, axis=1) / cnt
    return out[None, ...]


if __name__ == "__main__":
    # Small, module-consistent shapes (non-multiples exercise the padding path;
    # tm=tn=32 exercises the 2-D grid / accumulator / tile-skip paths).
    batch = 2
    n_in_pts = 60          # input_grid points
    n_out_pts = 72         # output_grid points
    n_dim = 2              # spatial dim of grids
    in_dim = 4             # input channels
    proj_hidden = 32       # projection_hidden_dim
    out_dim = 8            # output channels
    mlp_hidden = [32, 32]  # kernel MLP layers = [2*n_dim, 32, 32, out_dim]
    radius = 0.35

    key = jax.random.PRNGKey(0)
    keys = jax.random.split(key, 12)

    input_grid = jax.random.uniform(keys[0], (n_in_pts, n_dim), dtype=jnp.float32)
    output_grid = jax.random.uniform(keys[1], (n_out_pts, n_dim), dtype=jnp.float32)
    inp = jax.random.normal(keys[2], (batch, n_in_pts, in_dim), dtype=jnp.float32)

    def dense(k, fan_in, fan_out):
        return jax.random.normal(k, (fan_in, fan_out), dtype=jnp.float32) * (1.0 / jnp.sqrt(fan_in))

    # projection MLP: [in_dim, proj_hidden, out_dim]
    proj_params = (
        dense(keys[3], in_dim, proj_hidden),
        jax.random.normal(keys[4], (1, proj_hidden), dtype=jnp.float32) * 0.1,
        dense(keys[5], proj_hidden, out_dim),
        jax.random.normal(keys[6], (1, out_dim), dtype=jnp.float32) * 0.1,
    )
    # kernel MLP: [2*n_dim, 32, 32, out_dim]
    kernel_params = (
        dense(keys[7], 2 * n_dim, mlp_hidden[0]),
        jax.random.normal(keys[8], (1, mlp_hidden[0]), dtype=jnp.float32) * 0.1,
        dense(keys[9], mlp_hidden[0], mlp_hidden[1]),
        jax.random.normal(keys[10], (1, mlp_hidden[1]), dtype=jnp.float32) * 0.1,
        dense(keys[11], mlp_hidden[1], out_dim),
        jnp.zeros((1, out_dim), dtype=jnp.float32),
    )

    out = gno_forward(inp, input_grid, output_grid, proj_params, kernel_params, radius,
                      tm=32, tn=32)
    out = jax.block_until_ready(out)
    assert out.shape == (1, n_out_pts, out_dim), out.shape

    ref = gno_reference(inp, input_grid, output_grid, proj_params, kernel_params, radius)
    ref = jax.block_until_ready(ref)
    # tolerance accounts for the bf16 MXU operands in the pair-MLP matmuls (f32 accumulation)
    if not bool(jnp.allclose(out, ref, atol=2e-2, rtol=2e-2)):
        raise AssertionError("Pallas GNO kernel does not match JAX reference")

    print("KERNEL_OK")
</pallas_src>

<mosaic_0001>
module attributes {stable_mosaic.version = 11 : i64} {
  func.func @_proj_kernel(%arg0: i32, %arg1: memref<32x4xf32, #tpu.memory_space<vmem>>, %arg2: memref<4x128xf32, #tpu.memory_space<vmem>>, %arg3: memref<1x128xf32, #tpu.memory_space<vmem>>, %arg4: memref<128x128xf32, #tpu.memory_space<vmem>>, %arg5: memref<1x128xf32, #tpu.memory_space<vmem>>, %arg6: memref<32x128xf32, #tpu.memory_space<vmem>>) attributes {dimension_semantics = [#tpu.dimension_semantics<parallel>], iteration_bounds = array<i64: 2>, scalar_prefetch = 0 : i64, scratch_operands = 0 : i64, tpu.core_type = #tpu.core_type<tc>, window_params = [{transform_indices = @transform_0, window_bounds = array<i64: 32, 4>}, {pipeline_mode = #tpu.pipeline_mode<synchronous>, transform_indices = @transform_1, window_bounds = array<i64: 4, 128>}, {pipeline_mode = #tpu.pipeline_mode<synchronous>, transform_indices = @transform_2, window_bounds = array<i64: 1, 128>}, {pipeline_mode = #tpu.pipeline_mode<synchronous>, transform_indices = @transform_3, window_bounds = array<i64: 128, 128>}, {pipeline_mode = #tpu.pipeline_mode<synchronous>, transform_indices = @transform_4, window_bounds = array<i64: 1, 128>}, {transform_indices = @transform_5, window_bounds = array<i64: 32, 128>}]} {
    %c0 = arith.constant 0 : index
    %c0_0 = arith.constant 0 : index
    %0 = vector.load %arg1[%c0, %c0_0] : memref<32x4xf32, #tpu.memory_space<vmem>>, vector<32x4xf32>
    %c0_1 = arith.constant 0 : index
    %c0_2 = arith.constant 0 : index
    %1 = vector.load %arg2[%c0_1, %c0_2] : memref<4x128xf32, #tpu.memory_space<vmem>>, vector<4x128xf32>
    %cst = arith.constant dense<0.000000e+00> : vector<32x128xf32>
    %2 = tpu.matmul %0, %1, %cst {dimension_numbers = #tpu.dot_dimension_numbers<[1], [0], [0], [1], [0, 0, 1, 1], [], []>} : vector<32x4xf32>, vector<4x128xf32>, vector<32x128xf32> -> vector<32x128xf32>
    %c0_3 = arith.constant 0 : index
    %c0_4 = arith.constant 0 : index
    %3 = vector.load %arg3[%c0_3, %c0_4] : memref<1x128xf32, #tpu.memory_space<vmem>>, vector<1x128xf32>
    %4 = vector.broadcast %3 : vector<1x128xf32> to vector<32x128xf32>
    %5 = arith.addf %2, %4 : vector<32x128xf32>
    %cst_5 = arith.constant 5.000000e-01 : f32
    %6 = vector.broadcast %cst_5 : f32 to vector<32x128xf32>
    %7 = arith.mulf %6, %5 : vector<32x128xf32>
    %cst_6 = arith.constant 0.707106769 : f32
    %8 = vector.broadcast %cst_6 : f32 to vector<32x128xf32>
    %9 = arith.mulf %5, %8 : vector<32x128xf32>
    %10 = math.erf %9 : vector<32x128xf32>
    %cst_7 = arith.constant 1.000000e+00 : f32
    %11 = vector.broadcast %cst_7 : f32 to vector<32x128xf32>
    %12 = arith.addf %11, %10 : vector<32x128xf32>
    %13 = arith.mulf %7, %12 : vector<32x128xf32>
    %c0_8 = arith.constant 0 : index
    %c0_9 = arith.constant 0 : index
    %14 = vector.load %arg4[%c0_8, %c0_9] : memref<128x128xf32, #tpu.memory_space<vmem>>, vector<128x128xf32>
    %cst_10 = arith.constant dense<0.000000e+00> : vector<32x128xf32>
    %15 = tpu.matmul %13, %14, %cst_10 {dimension_numbers = #tpu.dot_dimension_numbers<[1], [0], [0], [1], [0, 0, 1, 1], [], []>} : vector<32x128xf32>, vector<128x128xf32>, vector<32x128xf32> -> vector<32x128xf32>
    %c0_11 = arith.constant 0 : index
    %c0_12 = arith.constant 0 : index
    %16 = vector.load %arg5[%c0_11, %c0_12] : memref<1x128xf32, #tpu.memory_space<vmem>>, vector<1x128xf32>
    %17 = vector.broadcast %16 : vector<1x128xf32> to vector<32x128xf32>
    %18 = arith.addf %15, %17 : vector<32x128xf32>
    %c0_13 = arith.constant 0 : index
    %c0_14 = arith.constant 0 : index
    %19 = vector.load %arg6[%c0_13, %c0_14] : memref<32x128xf32, #tpu.memory_space<vmem>>, vector<32x128xf32>
    tpu.vector_store %arg6[%c0_13, %c0_14], %18 {strides = array<i32>} : memref<32x128xf32, #tpu.memory_space<vmem>>, vector<32x128xf32>,
    return
  }
  func.func @transform_0(%arg0: i32) -> (i32, i32) {
    %c0_i32 = arith.constant 0 : i32
    %c0_i32_0 = arith.constant 0 : i32
    return %arg0, %c0_i32 : i32, i32
  }
  func.func @transform_1(%arg0: i32) -> (i32, i32) {
    %c0_i32 = arith.constant 0 : i32
    %c0_i32_0 = arith.constant 0 : i32
    %c0_i32_1 = arith.constant 0 : i32
    return %c0_i32, %c0_i32_0 : i32, i32
  }
  func.func @transform_2(%arg0: i32) -> (i32, i32) {
    %c0_i32 = arith.constant 0 : i32
    %c0_i32_0 = arith.constant 0 : i32
    %c0_i32_1 = arith.constant 0 : i32
    return %c0_i32, %c0_i32_0 : i32, i32
  }
  func.func @transform_3(%arg0: i32) -> (i32, i32) {
    %c0_i32 = arith.constant 0 : i32
    %c0_i32_0 = arith.constant 0 : i32
    %c0_i32_1 = arith.constant 0 : i32
    return %c0_i32, %c0_i32_0 : i32, i32
  }
  func.func @transform_4(%arg0: i32) -> (i32, i32) {
    %c0_i32 = arith.constant 0 : i32
    %c0_i32_0 = arith.constant 0 : i32
    %c0_i32_1 = arith.constant 0 : i32
    return %c0_i32, %c0_i32_0 : i32, i32
  }
  func.func @transform_5(%arg0: i32) -> (i32, i32) {
    %c0_i32 = arith.constant 0 : i32
    %c0_i32_0 = arith.constant 0 : i32
    return %arg0, %c0_i32 : i32, i32
  }
}

</mosaic_0001>

<llo_original>
// kernel: tpu_custom_call.1
$region0: #{tpu_custom_call.1}
  #allocation0 [shape = 'u32[]', space=smem, size = 0x4, offset = 0x4, fixed_abs, tag = 'smem constant byte address 0x4 - core index']
  #allocation1 [shape = 'u32[144,128]{1,0:T(1,128)}', space=vmem, size = 0x12000, scoped, tag = 'internal scratch']
  %s0 = inlined_call_operand.vmem [shape: f32[64,4], index: 0, kind: input, shape index: {}]
  %s1 = inlined_call_operand.vmem [shape: f32[4,128], index: 1, kind: input, shape index: {}]
  %s2 = inlined_call_operand.vmem [shape: f32[1,128], index: 2, kind: input, shape index: {}]
  %s3 = inlined_call_operand.hbm [shape: f32[128,128], index: 3, kind: input, shape index: {}]
  %s4 = inlined_call_operand.vmem [shape: f32[1,128], index: 4, kind: input, shape index: {}]
  %s5 = inlined_call_operand.hbm [shape: f32[64,128], index: 5, kind: output, shape index: {}]
  %s6 = sld [smem:[#allocation0]]
  $region57: #{tpu_custom_call.1} parent=0
    _
  %s8 = ssub.s32 1, %s6
  %s9 = scalar_select 0, %s8, %s6
  $region1: #{tpu_custom_call.1} parent=0
    #allocation2 [shape = 'u8[65536]{0}', space=vmem, size = 0x10000, scoped, tag = 'input window, operand 3, single buffered']
    #allocation3 [shape = 's32[2]{0}', space=sflag, size = 0x8, scoped, tag = 'scoped memory for tpu_custom_call.1']
    #allocation4 [shape = 's32[2]{0}', space=sflag, size = 0x8, scoped, tag = 'scoped memory for tpu_custom_call.1']
    #allocation5 [shape = 'u8[32768]{0}', space=vmem, size = 0x8000, scoped, tag = 'output window, operand 0']
    %10 = vsyncpa [#allocation3], 0
    %11 = vsyncpa [#allocation4], 0
    %s12 = scalar_lea.sflag [#allocation4], 1
    %13 = vsyncpa %s12, 0
    loop: start=0, step=1, limit=4
    $region2: #{tpu_custom_call.1} parent=1 // loop_pre_header
      _
    $region3: #{tpu_custom_call.1} parent=1 // loop_header
      %s15 = sphi 0, %s19
      %p16 = scmp.ge.s32.totalorder %s15, 4
      %s25 = sphi 0, %s27
      %s28 = sphi 0, %s25
      %s29 = sphi 0, %s28
      %s45 = sphi 0, %s29
      %s49 = sphi 0, %s49
      %s51 = sphi 0, %s49
      %s52 = sphi 0, %s51
      %s66 = sphi 0, %s52
      %s70 = sphi 0, %s70
      %s72 = sphi 0, %s70
      %s73 = sphi 0, %s72
      %s87 = sphi 0, %s73
      %s91 = sphi 0, %s91
      %s93 = sphi 0, %s91
      %s94 = sphi 0, %s93
      %s108 = sphi 0, %s94
      %s112 = sphi 0, %s112
      %s114 = sphi 0, %s112
      %s115 = sphi 0, %s114
      %s129 = sphi 0, %s115
      %s135 = sphi 0, %s137
      %s138 = sphi 0, %s135
      %s139 = sphi 0, %s138
      %s155 = sphi 0, %s139
    $region4: #{tpu_custom_call.1} parent=1 // loop_header_branch
      %18 = sbr.rel (%p16) target = $region8
    $region5: #{tpu_custom_call.1} parent=1 // loop_body
      %s20 = ssub.s32 %s15, 1
      %s21 = ssub.s32 %s15, 2
      %s22 = sadd.s32 %s15, 1
      %s23 = ssub.s32 %s15, %s22
      %p24 = scmp.eq.s32.totalorder %s23, 0
      %s26 = sadd.s32 %s25, 1
      %s27 = scalar_select %p24, %s25, %s26
      %p30 = pneg %p24
      %p31 = scmp.eq.s32.totalorder %s15, 1
      %p32 = por %p30, %p31
      %p33 = scmp.ne.s32.totalorder %s25, %s28
      %p34 = scmp.eq.s32.totalorder %s15, 0
      %p35 = por %p33, %p34
      %p36 = scmp.ne.s32.totalorder %s25, %s28
      %p37 = scmp.eq.s32.totalorder %s20, 1
      %p38 = por %p36, %p37
      %p39 = scmp.ne.s32.totalorder %s28, %s29
      %p40 = scmp.eq.s32.totalorder %s20, 0
      %p41 = por %p39, %p40
      %p42 = scmp.ne.s32.totalorder %s28, %s29
      %p43 = scmp.eq.s32.totalorder %s21, 1
      %p44 = por %p42, %p43
      %p46 = scmp.ne.s32.totalorder %s29, %s45
      %p47 = scmp.eq.s32.totalorder %s21, 0
      %p48 = por %p46, %p47
      %s50 = sadd.s32 %s49, 1
      %p53 = scmp.eq.s32.totalorder %s15, 1
      %p54 = scmp.ne.s32.totalorder %s49, %s51
      %p55 = scmp.eq.s32.totalorder %s15, 0
      %p56 = por %p54, %p55
      %p57 = scmp.ne.s32.totalorder %s49, %s51
      %p58 = scmp.eq.s32.totalorder %s20, 1
      %p59 = por %p57, %p58
      %p60 = scmp.ne.s32.totalorder %s51, %s52
      %p61 = scmp.eq.s32.totalorder %s20, 0
      %p62 = por %p60, %p61
      %p63 = scmp.ne.s32.totalorder %s51, %s52
      %p64 = scmp.eq.s32.totalorder %s21, 1
      %p65 = por %p63, %p64
      %p67 = scmp.ne.s32.totalorder %s52, %s66
      %p68 = scmp.eq.s32.totalorder %s21, 0
      %p69 = por %p67, %p68
      %s71 = sadd.s32 %s70, 1
      %p74 = scmp.eq.s32.totalorder %s15, 1
      %p75 = scmp.ne.s32.totalorder %s70, %s72
      %p76 = scmp.eq.s32.totalorder %s15, 0
      %p77 = por %p75, %p76
      %p78 = scmp.ne.s32.totalorder %s70, %s72
      %p79 = scmp.eq.s32.totalorder %s20, 1
      %p80 = por %p78, %p79
      %p81 = scmp.ne.s32.totalorder %s72, %s73
      %p82 = scmp.eq.s32.totalorder %s20, 0
      %p83 = por %p81, %p82
      %p84 = scmp.ne.s32.totalorder %s72, %s73
      %p85 = scmp.eq.s32.totalorder %s21, 1
      %p86 = por %p84, %p85
      %p88 = scmp.ne.s32.totalorder %s73, %s87
      %p89 = scmp.eq.s32.totalorder %s21, 0
      %p90 = por %p88, %p89
      %s92 = sadd.s32 %s91, 1
      %p95 = scmp.eq.s32.totalorder %s15, 1
      %p96 = scmp.ne.s32.totalorder %s91, %s93
      %p97 = scmp.eq.s32.totalorder %s15, 0
      %p98 = por %p96, %p97
      %p99 = scmp.ne.s32.totalorder %s91, %s93
      %p100 = scmp.eq.s32.totalorder %s20, 1
      %p101 = por %p99, %p100
      %p102 = scmp.ne.s32.totalorder %s93, %s94
      %p103 = scmp.eq.s32.totalorder %s20, 0
      %p104 = por %p102, %p103
      %p105 = scmp.ne.s32.totalorder %s93, %s94
      %p106 = scmp.eq.s32.totalorder %s21, 1
      %p107 = por %p105, %p106
      %p109 = scmp.ne.s32.totalorder %s94, %s108
      %p110 = scmp.eq.s32.totalorder %s21, 0
      %p111 = por %p109, %p110
      %s113 = sadd.s32 %s112, 1
      %p116 = scmp.eq.s32.totalorder %s15, 1
      %p117 = scmp.ne.s32.totalorder %s112, %s114
      %p118 = scmp.eq.s32.totalorder %s15, 0
      %p119 = por %p117, %p118
      %p120 = scmp.ne.s32.totalorder %s112, %s114
      %p121 = scmp.eq.s32.totalorder %s20, 1
      %p122 = por %p120, %p121
      %p123 = scmp.ne.s32.totalorder %s114, %s115
      %p124 = scmp.eq.s32.totalorder %s20, 0
      %p125 = por %p123, %p124
      %p126 = scmp.ne.s32.totalorder %s114, %s115
      %p127 = scmp.eq.s32.totalorder %s21, 1
      %p128 = por %p126, %p127
      %p130 = scmp.ne.s32.totalorder %s115, %s129
      %p131 = scmp.eq.s32.totalorder %s21, 0
      %p132 = por %p130, %p131
      %s133 = ssub.s32 %s15, %s22
      %p134 = scmp.eq.s32.totalorder %s133, 0
      %s136 = sadd.s32 %s135, 1
      %s137 = scalar_select %p134, %s135, %s136
      %p140 = pneg %p134
      %p141 = scmp.eq.s32.totalorder %s15, 1
      %p142 = por %p140, %p141
      %p143 = scmp.ne.s32.totalorder %s135, %s138
      %p144 = scmp.eq.s32.totalorder %s15, 0
      %p145 = por %p143, %p144
      %p146 = scmp.ne.s32.totalorder %s135, %s138
      %p147 = scmp.eq.s32.totalorder %s20, 1
      %p148 = por %p146, %p147
      %p149 = scmp.ne.s32.totalorder %s138, %s139
      %p150 = scmp.eq.s32.totalorder %s20, 0
      %p151 = por %p149, %p150
      %p152 = scmp.ne.s32.totalorder %s138, %s139
      %p153 = scmp.eq.s32.totalorder %s21, 1
      %p154 = por %p152, %p153
      %p156 = scmp.ne.s32.totalorder %s139, %s155
      %p157 = scmp.eq.s32.totalorder %s21, 0
      %p158 = por %p156, %p157
      %p159 = scmp.le.s32.totalorder 1, %s15
      %p160 = scmp.lt.s32.totalorder %s15, 3
      %p161 = pnand %p159, %p160
      %p162 = pneg %p161
      // Predicated region
      $region9: #{tpu_custom_call.1} parent=5 // pred_check
        _
      $region10: #{tpu_custom_call.1} parent=5 // pred_check_branch
        %164 = sbr.rel (%p161) target = $region12
      $region11: #{tpu_custom_call.1} parent=5 // pred_region
        %s165 = ssub.s32 %s15, 1
        // Predicated region
        $region13: #{tpu_custom_call.1} parent=11 // pred_check
          %p166 = pneg %p62
        $region14: #{tpu_custom_call.1} parent=11 // pred_check_branch
          %168 = sbr.rel (%p166) target = $region16
        $region15: #{tpu_custom_call.1} parent=11 // pred_region
          _
        $region16: #{tpu_custom_call.1} parent=11 // pred_fallthru
          _
        // Predicated region
        $region17: #{tpu_custom_call.1} parent=11 // pred_check
          %p169 = pneg %p83
        $region18: #{tpu_custom_call.1} parent=11 // pred_check_branch
          %171 = sbr.rel (%p169) target = $region20
        $region19: #{tpu_custom_call.1} parent=11 // pred_region
          _
        $region20: #{tpu_custom_call.1} parent=11 // pred_fallthru
          _
        // Predicated region
        $region21: #{tpu_custom_call.1} parent=11 // pred_check
          %p172 = pneg %p104
        $region22: #{tpu_custom_call.1} parent=11 // pred_check_branch
          %174 = sbr.rel (%p172) target = $region24
        $region23: #{tpu_custom_call.1} parent=11 // pred_region
          %s176 = ssub.s32 2048, 2048
          %177 = vsyncadd [#allocation3], %s176
          %s178 = sshll.u32 [#allocation2], 4
          %s179 = int_to_ptr.vmem [resolvable:$true] %s178
          %184 = dma.hbm_to_vmem [thread:$0]  %s3, 2048, %s179, [#allocation3], 128, 128, 8
        $region24: #{tpu_custom_call.1} parent=11 // pred_fallthru
          _
        // Predicated region
        $region25: #{tpu_custom_call.1} parent=11 // pred_check
          %p185 = pneg %p125
        $region26: #{tpu_custom_call.1} parent=11 // pred_check_branch
          %187 = sbr.rel (%p185) target = $region28
        $region27: #{tpu_custom_call.1} parent=11 // pred_region
          _
        $region28: #{tpu_custom_call.1} parent=11 // pred_fallthru
          _
      $region12: #{tpu_custom_call.1} parent=5 // pred_fallthru
        _
      %p188 = scmp.lt.s32.totalorder %s15, 2
      // Predicated region
      $region29: #{tpu_custom_call.1} parent=5 // pred_check
        %p189 = pneg %p188
      $region30: #{tpu_custom_call.1} parent=5 // pred_check_branch
        %191 = sbr.rel (%p189) target = $region32
      $region31: #{tpu_custom_call.1} parent=5 // pred_region
        // Predicated region
        $region33: #{tpu_custom_call.1} parent=31 // pred_check
          %p192 = pneg %p35
        $region34: #{tpu_custom_call.1} parent=31 // pred_check_branch
          %194 = sbr.rel (%p192) target = $region36
        $region35: #{tpu_custom_call.1} parent=31 // pred_region
          %s195 = smul.u32 4, %s15
          %p196 = scmp.lt.s32.totalorder %s195, 7
          %s197 = scalar_select %p196, %s195, 7
          %s198 = smul.addr %s197, 8
          %s199 = scalar_lea.vmem %s0, %s198
          %s200 = smul.u32 4, %s15
        $region36: #{tpu_custom_call.1} parent=31 // pred_fallthru
          _
      $region32: #{tpu_custom_call.1} parent=5 // pred_fallthru
        _
      %p201 = scmp.le.s32.totalorder 1, %s15
      %p202 = scmp.lt.s32.totalorder %s15, 3
      %p203 = pnand %p201, %p202
      %p204 = pneg %p203
      // Predicated region
      $region37: #{tpu_custom_call.1} parent=5 // pred_check
        _
      $region38: #{tpu_custom_call.1} parent=5 // pred_check_branch
        %206 = sbr.rel (%p203) target = $region40
      $region39: #{tpu_custom_call.1} parent=5 // pred_region
        %s207 = ssub.s32 %s15, 1
        // Predicated region
        $region41: #{tpu_custom_call.1} parent=39 // pred_check
          %p208 = pneg %p104
        $region42: #{tpu_custom_call.1} parent=39 // pred_check_branch
          %210 = sbr.rel (%p208) target = $region44
        $region43: #{tpu_custom_call.1} parent=39 // pred_region
          %211 = dma.done [#allocation3], 2048
        $region44: #{tpu_custom_call.1} parent=39 // pred_fallthru
          _
        %s212 = smul.u32 4, %s20
        %p213 = scmp.lt.s32.totalorder %s212, 7
        %s214 = scalar_select %p213, %s212, 7
        %s215 = smul.addr %s214, 8
        %s216 = scalar_lea.vmem %s0, %s215
        %p217 = pneg %p41
        %p218 = pneg %p38
        %p219 = pneg %p62
        %p220 = pneg %p59
        %p221 = pneg %p83
        %p222 = pneg %p80
        %p223 = pneg %p104
        %p224 = pneg %p101
        %p225 = pneg %p125
        %p226 = pneg %p122
        %p227 = pneg %p151
        %p228 = pneg %p148
        %s229 = sand.u32 %s138, 1
        %s230 = scalar_lea.sflag [#allocation4], %s229
        %s231 = sand.u32 %s138, 1
        %s232 = smul.addr %s231, 32
        %s233 = scalar_lea.vmem [#allocation5], %s232
        %s234 = smul.u32 4, %s20
        %p235 = scmp.lt.s32.totalorder %s234, 7
        %s236 = scalar_select %p235, %s234, 7
        %s237 = smul.addr %s236, 8
        %s238 = scalar_lea.vmem %s0, %s237
        %s239 = smul.u32 4, %s20
        %s240 = smul.u32 4, %s20
        %v241 = vld [vmem:[%s238] sm:$0xff]
        %v242 = vld [vmem:[%s238 + $0x8] sm:$0xff]
        %v243 = vld [vmem:[%s238 + $0x10] sm:$0xff]
        %v244 = vld [vmem:[%s238 + $0x18] sm:$0xff]
        %v245 = vld [vmem:[%s1] sm:$0xf]
        %v246 = vld [vmem:[%s2] sm:$0x1]
        %v248 = vlaneseq
        %v249 = vshrl.u32 %v248, 7
        %v250 = vsub.s32 0, %v249
        %v251 = vrot.slane %v246, %v250
        %vm253 = vcmask 31744
        %v255 = vsel %vm253, %v241, 0
        %v258 = vsel %vm253, %v242, 0
        %v261 = vsel %vm253, %v243, 0
        %v264 = vsel %vm253, %v244, 0
        %vm266 = vcmask 1043456
        %v268 = vsel %vm266, %v245, 0
        %270 = vmatprep.subr.mxu0 0.0
        %271 = vmatpush1.msra.mxu0 %v268
        %272 = vmatprep.subr.mxu0 0.0
        %273 = vmatpush1.msra.mxu0 0.0
        %274 = vmatprep.subr.mxu0 0.0
        %275 = vmatpush1.msra.mxu0 0.0
        %276 = vmatprep.subr.mxu0 0.0
        %277 = vmatpush1.msra.mxu0 0.0
        %278 = vmatprep.subr.mxu0 0.0
        %279 = vmatpush1.msra.mxu0 0.0
        %280 = vmatprep.subr.mxu0 0.0
        %281 = vmatpush1.msra.mxu0 0.0
        %282 = vmatprep.subr.mxu0 0.0
        %283 = vmatpush1.msra.mxu0 0.0
        %284 = vmatprep.subr.mxu0 0.0
        %285 = vmatpush1.msra.mxu0 0.0
        %286 = vmatprep.subr.mxu0 0.0
        %287 = vmatpush1.msra.mxu0 0.0
        %288 = vmatprep.subr.mxu0 0.0
        %289 = vmatpush1.msra.mxu0 0.0
        %290 = vmatprep.subr.mxu0 0.0
        %291 = vmatpush1.msra.mxu0 0.0
        %292 = vmatprep.subr.mxu0 0.0
        %293 = vmatpush1.msra.mxu0 0.0
        %294 = vmatprep.subr.mxu0 0.0
        %295 = vmatpush1.msra.mxu0 0.0
        %296 = vmatprep.subr.mxu0 0.0
        %297 = vmatpush1.msra.mxu0 0.0
        %298 = vmatprep.subr.mxu0 0.0
        %299 = vmatpush1.msra.mxu0 0.0
        %300 = vmatprep.subr.mxu0 0.0
        %301 = vmatpush1.msra.mxu0 0.0
        %302 = vmatprep.subr.mxu0 0.0
        %303 = vmatpush1.msra.mxu0 0.0
        %304 = vmatprep.subr.mxu0 0.0
        %305 = vmatpush1.msra.mxu0 0.0
        %306 = vmatprep.subr.mxu0 0.0
        %307 = vmatpush1.msra.mxu0 0.0
        %308 = vmatprep.subr.mxu0 0.0
        %309 = vmatpush1.msra.mxu0 0.0
        %310 = vmatprep.subr.mxu0 0.0
        %311 = vmatpush1.msra.mxu0 0.0
        %312 = vmatprep.subr.mxu0 0.0
        %313 = vmatpush1.msra.mxu0 0.0
        %314 = vmatprep.subr.mxu0 0.0
        %315 = vmatpush1.msra.mxu0 0.0
        %316 = vmatprep.subr.mxu0 0.0
        %317 = vmatpush1.msra.mxu0 0.0
        %318 = vmatprep.subr.mxu0 0.0
        %319 = vmatpush1.msra.mxu0 0.0
        %320 = vmatprep.subr.mxu0 0.0
        %321 = vmatpush1.msra.mxu0 0.0
        %322 = vmatprep.subr.mxu0 0.0
        %323 = vmatpush1.msra.mxu0 0.0
        %324 = vmatprep.subr.mxu0 0.0
        %325 = vmatpush1.msra.mxu0 0.0
        %326 = vmatprep.subr.mxu0 0.0
        %327 = vmatpush1.msra.mxu0 0.0
        %328 = vmatprep.subr.mxu0 0.0
        %329 = vmatpush1.msra.mxu0 0.0
        %330 = vmatprep.subr.mxu0 0.0
        %331 = vmatpush1.msra.mxu0 0.0
        %332 = vmatprep.subr.mxu0 0.0
        %333 = vmatpush1.msra.mxu0 0.0
        %334 = vmatprep.mubr.f32.mxu0 0.0
        %335 = vmatmul.mubr.f32.gmra.mrb[0].mxu0 %v255
        %v336 = vpop.f32.mrb[0].mxu0
        %v337 = vadd.f32 %v251, %v336
        %v338 = vpop.f32.mrb[0].mxu0
        %339 = vmatprep.mubr.f32.mxu0 0.0
        %340 = vmatmul.mubr.f32.gmra.mrb[0].mxu0 %v258
        %v341 = vpop.f32.mrb[0].mxu0
        %v342 = vadd.f32 %v251, %v341
        %v343 = vpop.f32.mrb[0].mxu0
        %344 = vmatprep.mubr.f32.mxu0 0.0
        %345 = vmatmul.mubr.f32.gmra.mrb[0].mxu0 %v261
        %v346 = vpop.f32.mrb[0].mxu0
        %v347 = vadd.f32 %v251, %v346
        %v348 = vpop.f32.mrb[0].mxu0
        %349 = vmatprep.mubr.f32.mxu0 0.0
        %350 = vmatmul.mubr.f32.gmra.mrb[0].mxu0 %v264
        %v351 = vpop.f32.mrb[0].mxu0
        %v352 = vadd.f32 %v251, %v351
        %v353 = vpop.f32.mrb[0].mxu0
        %354 = vdwg.mxu0
        %v355 = vmul.f32 %v337, 0.5
        %v356 = vmul.f32 %v342, 0.5
        %v357 = vmul.f32 %v347, 0.5
        %v358 = vmul.f32 %v352, 0.5
        %v359 = vmul.f32 %v337, 0.70710677
        %v360 = vmul.f32 %v342, 0.70710677
        %v361 = vmul.f32 %v347, 0.70710677
        %v362 = vmul.f32 %v352, 0.70710677
        %v363 = verf.f32.pop %v359
        %v364 = verf.f32.pop %v360
        %v365 = verf.f32.pop %v361
        %v366 = verf.f32.pop %v362
        %v367 = vadd.f32 %v363, 1.0
        %v368 = vadd.f32 %v364, 1.0
        %v369 = vadd.f32 %v365, 1.0
        %v370 = vadd.f32 %v366, 1.0
        %v371 = vmul.f32 %v355, %v367
        %v372 = vmul.f32 %v356, %v368
        %v373 = vmul.f32 %v357, %v369
        %v374 = vmul.f32 %v358, %v370
        %v375 = vld [vmem:[#allocation2] sm:$0xff]
        %v376 = vld [vmem:[#allocation2 + $0x8] sm:$0xff]
        %v377 = vld [vmem:[#allocation2 + $0x10] sm:$0xff]
        %v378 = vld [vmem:[#allocation2 + $0x18] sm:$0xff]
        %v379 = vld [vmem:[#allocation2 + $0x20] sm:$0xff]
        %v380 = vld [vmem:[#allocation2 + $0x28] sm:$0xff]
        %v381 = vld [vmem:[#allocation2 + $0x30] sm:$0xff]
        %v382 = vld [vmem:[#allocation2 + $0x38] sm:$0xff]
        %v383 = vld [vmem:[#allocation2 + $0x40] sm:$0xff]
        %v384 = vld [vmem:[#allocation2 + $0x48] sm:$0xff]
        %v385 = vld [vmem:[#allocation2 + $0x50] sm:$0xff]
        %v386 = vld [vmem:[#allocation2 + $0x58] sm:$0xff]
        %v387 = vld [vmem:[#allocation2 + $0x60] sm:$0xff]
        %v388 = vld [vmem:[#allocation2 + $0x68] sm:$0xff]
        %v389 = vld [vmem:[#allocation2 + $0x70] sm:$0xff]
        %v390 = vld [vmem:[#allocation2 + $0x78] sm:$0xff]
        %v391 = vld [vmem:[%s4] sm:$0x1]
        %v393 = vlaneseq
        %v394 = vshrl.u32 %v393, 7
        %v395 = vsub.s32 0, %v394
        %v396 = vrot.slane %v391, %v395
        %398 = vmatprep.subr.mxu0 0.0
        %399 = vmatpush1.msra.mxu0 %v375
        %400 = vmatprep.subr.mxu0 0.0
        %401 = vmatpush1.msra.mxu0 %v376
        %402 = vmatprep.subr.mxu0 0.0
        %403 = vmatpush1.msra.mxu0 %v377
        %404 = vmatprep.subr.mxu0 0.0
        %405 = vmatpush1.msra.mxu0 %v378
        %406 = vmatprep.subr.mxu0 0.0
        %407 = vmatpush1.msra.mxu0 %v379
        %408 = vmatprep.subr.mxu0 0.0
        %409 = vmatpush1.msra.mxu0 %v380
        %410 = vmatprep.subr.mxu0 0.0
        %411 = vmatpush1.msra.mxu0 %v381
        %412 = vmatprep.subr.mxu0 0.0
        %413 = vmatpush1.msra.mxu0 %v382
        %414 = vmatprep.subr.mxu0 0.0
        %415 = vmatpush1.msra.mxu0 %v383
        %416 = vmatprep.subr.mxu0 0.0
        %417 = vmatpush1.msra.mxu0 %v384
        %418 = vmatprep.subr.mxu0 0.0
        %419 = vmatpush1.msra.mxu0 %v385
        %420 = vmatprep.subr.mxu0 0.0
        %421 = vmatpush1.msra.mxu0 %v386
        %422 = vmatprep.subr.mxu0 0.0
        %423 = vmatpush1.msra.mxu0 %v387
        %424 = vmatprep.subr.mxu0 0.0
        %425 = vmatpush1.msra.mxu0 %v388
        %426 = vmatprep.subr.mxu0 0.0
        %427 = vmatpush1.msra.mxu0 %v389
        %428 = vmatprep.subr.mxu0 0.0
        %429 = vmatpush1.msra.mxu0 %v390
        %430 = vmatprep.subr.mxu0 0.0
        %431 = vmatpush1.msra.mxu0 0.0
        %432 = vmatprep.subr.mxu0 0.0
        %433 = vmatpush1.msra.mxu0 0.0
        %434 = vmatprep.subr.mxu0 0.0
        %435 = vmatpush1.msra.mxu0 0.0
        %436 = vmatprep.subr.mxu0 0.0
        %437 = vmatpush1.msra.mxu0 0.0
        %438 = vmatprep.subr.mxu0 0.0
        %439 = vmatpush1.msra.mxu0 0.0
        %440 = vmatprep.subr.mxu0 0.0
        %441 = vmatpush1.msra.mxu0 0.0
        %442 = vmatprep.subr.mxu0 0.0
        %443 = vmatpush1.msra.mxu0 0.0
        %444 = vmatprep.subr.mxu0 0.0
        %445 = vmatpush1.msra.mxu0 0.0
        %446 = vmatprep.subr.mxu0 0.0
        %447 = vmatpush1.msra.mxu0 0.0
        %448 = vmatprep.subr.mxu0 0.0
        %449 = vmatpush1.msra.mxu0 0.0
        %450 = vmatprep.subr.mxu0 0.0
        %451 = vmatpush1.msra.mxu0 0.0
        %452 = vmatprep.subr.mxu0 0.0
        %453 = vmatpush1.msra.mxu0 0.0
        %454 = vmatprep.subr.mxu0 0.0
        %455 = vmatpush1.msra.mxu0 0.0
        %456 = vmatprep.subr.mxu0 0.0
        %457 = vmatpush1.msra.mxu0 0.0
        %458 = vmatprep.subr.mxu0 0.0
        %459 = vmatpush1.msra.mxu0 0.0
        %460 = vmatprep.subr.mxu0 0.0
        %461 = vmatpush1.msra.mxu0 0.0
        %462 = vmatprep.mubr.f32.mxu0 0.0
        %463 = vmatmul.mubr.f32.gmra.mrb[0].mxu0 %v371
        %v464 = vpop.f32.mrb[0].mxu0
        %v465 = vadd.f32 %v396, %v464
        %v466 = vpop.f32.mrb[0].mxu0
        %467 = vmatprep.mubr.f32.mxu0 0.0
        %468 = vmatmul.mubr.f32.gmra.mrb[0].mxu0 %v372
        %v469 = vpop.f32.mrb[0].mxu0
        %v470 = vadd.f32 %v396, %v469
        %v471 = vpop.f32.mrb[0].mxu0
        %472 = vmatprep.mubr.f32.mxu0 0.0
        %473 = vmatmul.mubr.f32.gmra.mrb[0].mxu0 %v373
        %v474 = vpop.f32.mrb[0].mxu0
        %v475 = vadd.f32 %v396, %v474
        %v476 = vpop.f32.mrb[0].mxu0
        %477 = vmatprep.mubr.f32.mxu0 0.0
        %478 = vmatmul.mubr.f32.gmra.mrb[0].mxu0 %v374
        %v479 = vpop.f32.mrb[0].mxu0
        %v480 = vadd.f32 %v396, %v479
        %v481 = vpop.f32.mrb[0].mxu0
        %482 = vdwg.mxu0
        %483 = vst [vmem:[%s233] sm:$0xff] %v465
        %484 = vst [vmem:[%s233 + $0x8] sm:$0xff] %v470
        %485 = vst [vmem:[%s233 + $0x10] sm:$0xff] %v475
        %486 = vst [vmem:[%s233 + $0x18] sm:$0xff] %v480
        %s487 = sand.u32 %s138, 1
        %s488 = scalar_lea.sflag [#allocation4], %s487
        %s489 = sand.u32 %s138, 1
        %s490 = smul.addr %s489, 32
        %s491 = scalar_lea.vmem [#allocation5], %s490
        // Predicated region
        $region45: #{tpu_custom_call.1} parent=39 // pred_check
          %p492 = pneg %p148
        $region46: #{tpu_custom_call.1} parent=39 // pred_check_branch
          %494 = sbr.rel (%p492) target = $region48
        $region47: #{tpu_custom_call.1} parent=39 // pred_region
          %s495 = smul.u32 4, %s20
          %s497 = ssub.s32 512, 512
          %498 = vsyncadd %s488, %s497
          %s499 = smul.addr %s495, 128
          %s500 = scalar_lea.hbm %s5, %s499
          %s501 = sshll.u32 %s491, 4
          %s502 = int_to_ptr.vmem [resolvable:$true] %s501
          %507 = dma.vmem_to_hbm [thread:$0]  %s502, 512, %s500, %s488, 128, 128, 8
        $region48: #{tpu_custom_call.1} parent=39 // pred_fallthru
          _
      $region40: #{tpu_custom_call.1} parent=5 // pred_fallthru
        _
      %p508 = scmp.le.s32.totalorder 2, %s15
      // Predicated region
      $region49: #{tpu_custom_call.1} parent=5 // pred_check
        %p509 = pneg %p508
      $region50: #{tpu_custom_call.1} parent=5 // pred_check_branch
        %511 = sbr.rel (%p509) target = $region52
      $region51: #{tpu_custom_call.1} parent=5 // pred_region
        %s512 = ssub.s32 %s15, 2
        // Predicated region
        $region53: #{tpu_custom_call.1} parent=51 // pred_check
          %p513 = pneg %p154
        $region54: #{tpu_custom_call.1} parent=51 // pred_check_branch
          %515 = sbr.rel (%p513) target = $region56
        $region55: #{tpu_custom_call.1} parent=51 // pred_region
          %s516 = sand.u32 %s139, 1
          %s517 = scalar_lea.sflag [#allocation4], %s516
          %s518 = sand.u32 %s139, 1
          %s519 = smul.addr %s518, 32
          %s520 = scalar_lea.vmem [#allocation5], %s519
          %521 = dma.done %s517, 512
        $region56: #{tpu_custom_call.1} parent=51 // pred_fallthru
          _
      $region52: #{tpu_custom_call.1} parent=5 // pred_fallthru
        _
    $region6: #{tpu_custom_call.1} parent=1 // loop_footer
      %s19 = sadd.s32 1, %s15
    $region7: #{tpu_custom_call.1} parent=1 // loop_footer_branch
      %14 = sbr.rel target = $region3
    $region8: #{tpu_custom_call.1} parent=1 // loop_exit
      _
    %522 = vsyncpa [#allocation3], 1
    %s523 = scalar_lea.sflag [#allocation3], 1
    %524 = vsyncpa %s523, 1
    %525 = vsyncpa [#allocation4], 1
    %s526 = scalar_lea.sflag [#allocation4], 1
    %527 = vsyncpa %s526, 1

</llo_original>
